<compile_context>
chip_gen: v7x
topology: tpu7x:2x2x1
jax: 0.10.0
libtpu: 0.0.40
codegen_flags: <defaults>
</compile_context>

<pallas_src>
import functools
import math

import jax
import jax.numpy as jnp
from jax.experimental import pallas as pl
from jax.experimental.pallas import tpu as pltpu


def _round_up(x, m):
    return (x + m - 1) // m * m


def _masked_linear_kernel(x_ref, w_ref, xd_ref, dw_ref, b_ref, o_ref, acc_ref):
    """One (i, j, k) grid step of z = x @ W.T - x * diag(W) + b."""
    k = pl.program_id(2)

    @pl.when(k == 0)
    def _():
        acc_ref[...] = jnp.zeros_like(acc_ref)

    # x_tile: (TM, TK), w_tile: (TN, TK).  Contract along axis 1 of both so
    # the MXU computes x @ W.T without materializing a transpose.
    acc_ref[...] += jax.lax.dot_general(
        x_ref[...],
        w_ref[...],
        dimension_numbers=(((1,), (1,)), ((), ())),
        preferred_element_type=jnp.float32,
    )

    @pl.when(k == pl.num_programs(2) - 1)
    def _():
        # Diagonal correction (replaces the explicit mask) + bias, applied
        # exactly once per output tile, then a lane-dense store.
        z = acc_ref[...] - xd_ref[...].astype(jnp.float32) * dw_ref[...].astype(jnp.float32)
        o_ref[...] = (z + b_ref[...].astype(jnp.float32)).astype(o_ref.dtype)


@functools.partial(jax.jit, static_argnames=("tile_m", "tile_d"))
def feature_regression(x, W, b, *, tile_m=128, tile_d=256):
    """x: [B, D], W: [D, D] (out, in), b: [D] -> x @ (W * (1 - I)).T + b."""
    B, D = x.shape
    out_dtype = x.dtype

    # Clamp tiles to the (padded) problem size; keep blocks (8, 128)-aligned
    # and the output last dim a multiple of 128 (lane-dense stores).
    tm = min(tile_m, _round_up(B, 8))
    td = min(tile_d, _round_up(D, 128))
    Bp = _round_up(B, tm)
    Dp = _round_up(D, td)

    xp = jnp.pad(x, ((0, Bp - B), (0, Dp - D)))
    Wp = jnp.pad(W, ((0, Dp - D), (0, Dp - D)))
    bp = jnp.pad(b, (0, Dp - D)).reshape(1, Dp)
    dwp = jnp.pad(jnp.diagonal(W), (0, Dp - D)).reshape(1, Dp)

    grid = (Bp // tm, Dp // td, Dp // td)

    out = pl.pallas_call(
        _masked_linear_kernel,
        out_shape=jax.ShapeDtypeStruct((Bp, Dp), out_dtype),
        grid_spec=pltpu.PrefetchScalarGridSpec(
            num_scalar_prefetch=0,
            grid=grid,
            in_specs=[
                pl.BlockSpec((tm, td), lambda i, j, k: (i, k)),   # x  (matmul K-tile)
                pl.BlockSpec((td, td), lambda i, j, k: (j, k)),   # W  (N, K) tile
                pl.BlockSpec((tm, td), lambda i, j, k: (i, j)),   # x  (diag correction)
                pl.BlockSpec((1, td), lambda i, j, k: (0, j)),    # diag(W)
                pl.BlockSpec((1, td), lambda i, j, k: (0, j)),    # bias
            ],
            out_specs=pl.BlockSpec((tm, td), lambda i, j, k: (i, j)),
            scratch_shapes=[pltpu.VMEM((tm, td), jnp.float32)],
        ),
        compiler_params=pltpu.CompilerParams(
            # M / N axes shard across v7x's two TensorCores; only the K
            # reduction must stay sequential.
            dimension_semantics=("parallel", "parallel", "arbitrary"),
            # Explicit VMEM budget that is safe on v5e/v6e (128 MiB) and v7x
            # (64 MiB); double-buffered tiles at default sizes use < 4 MiB.
            vmem_limit_bytes=32 * 1024 * 1024,
        ),
    )(xp, Wp, xp, dwp, bp)

    return out[:B, :D]


if __name__ == "__main__":
    def make_inputs(key, B, D):
        kx, kw, kb = jax.random.split(key, 3)
        # reset_parameters(): uniform(-stdv, stdv), stdv = 1/sqrt(input_size).
        stdv = 1.0 / math.sqrt(D)
        W = jax.random.uniform(kw, (D, D), jnp.float32, minval=-stdv, maxval=stdv)
        b = jax.random.uniform(kb, (D,), jnp.float32, minval=-stdv, maxval=stdv)
        x = jax.random.normal(kx, (B, D), jnp.float32)
        return x, W, b

    def reference(x, W, b):
        D = W.shape[0]
        m = jnp.ones((D, D), jnp.float32) - jnp.eye(D, dtype=jnp.float32)
        return x @ (W * m).T + b

    # Production-like small shape (single grid step after padding to 128 lanes).
    x, W, b = make_inputs(jax.random.PRNGKey(0), 8, 32)
    out = jax.block_until_ready(feature_regression(x, W, b))
    assert out.shape == (8, 32)
    assert jnp.allclose(out, reference(x, W, b), atol=1e-5, rtol=1e-5)

    # Larger, non-tile-aligned shape exercising the (M, N, K) grid, padding,
    # k==0 init and last-k finalize paths.
    x2, W2, b2 = make_inputs(jax.random.PRNGKey(1), 16, 300)
    out2 = jax.block_until_ready(feature_regression(x2, W2, b2))
    assert out2.shape == (16, 300)
    assert jnp.allclose(out2, reference(x2, W2, b2), atol=1e-4, rtol=1e-4)

    print("KERNEL_OK")
</pallas_src>

<mosaic_0001>
module attributes {stable_mosaic.version = 11 : i64} {
  func.func @_masked_linear_kernel(%arg0: i32, %arg1: i32, %arg2: i32, %arg3: memref<8x128xf32, #tpu.memory_space<vmem>>, %arg4: memref<128x128xf32, #tpu.memory_space<vmem>>, %arg5: memref<8x128xf32, #tpu.memory_space<vmem>>, %arg6: memref<1x128xf32, #tpu.memory_space<vmem>>, %arg7: memref<1x128xf32, #tpu.memory_space<vmem>>, %arg8: memref<8x128xf32, #tpu.memory_space<vmem>>, %arg9: memref<8x128xf32, #tpu.memory_space<vmem>>) attributes {dimension_semantics = [#tpu.dimension_semantics<parallel>, #tpu.dimension_semantics<parallel>, #tpu.dimension_semantics<arbitrary>], iteration_bounds = array<i64: 1, 1, 1>, scalar_prefetch = 0 : i64, scratch_operands = 1 : i64, tpu.core_type = #tpu.core_type<tc>, window_params = [{transform_indices = @transform_0, window_bounds = array<i64: 8, 128>}, {transform_indices = @transform_1, window_bounds = array<i64: 128, 128>}, {transform_indices = @transform_2, window_bounds = array<i64: 8, 128>}, {transform_indices = @transform_3, window_bounds = array<i64: 1, 128>}, {transform_indices = @transform_4, window_bounds = array<i64: 1, 128>}, {transform_indices = @transform_5, window_bounds = array<i64: 8, 128>}]} {
    %c0_i32 = arith.constant 0 : i32
    %0 = arith.cmpi eq, %arg2, %c0_i32 : i32
    %1 = arith.extui %0 : i1 to i32
    %c0_i32_0 = arith.constant 0 : i32
    %2 = arith.cmpi ne, %1, %c0_i32_0 : i32
    scf.if %2 {
      %cst_10 = arith.constant 0.000000e+00 : f32
      %12 = vector.broadcast %cst_10 : f32 to vector<8x128xf32>
      %c0_11 = arith.constant 0 : index
      %c0_12 = arith.constant 0 : index
      %13 = vector.load %arg9[%c0_11, %c0_12] : memref<8x128xf32, #tpu.memory_space<vmem>>, vector<8x128xf32>
      tpu.vector_store %arg9[%c0_11, %c0_12], %12 {strides = array<i32>} : memref<8x128xf32, #tpu.memory_space<vmem>>, vector<8x128xf32>,
    } else {
    }
    %c0 = arith.constant 0 : index
    %c0_1 = arith.constant 0 : index
    %3 = vector.load %arg9[%c0, %c0_1] : memref<8x128xf32, #tpu.memory_space<vmem>>, vector<8x128xf32>
    %c0_2 = arith.constant 0 : index
    %c0_3 = arith.constant 0 : index
    %4 = vector.load %arg3[%c0_2, %c0_3] : memref<8x128xf32, #tpu.memory_space<vmem>>, vector<8x128xf32>
    %c0_4 = arith.constant 0 : index
    %c0_5 = arith.constant 0 : index
    %5 = vector.load %arg4[%c0_4, %c0_5] : memref<128x128xf32, #tpu.memory_space<vmem>>, vector<128x128xf32>
    %cst = arith.constant dense<0.000000e+00> : vector<8x128xf32>
    %6 = tpu.matmul %4, %5, %cst {dimension_numbers = #tpu.dot_dimension_numbers<[1], [1], [0], [0], [0, 0, 1, 0], [], []>} : vector<8x128xf32>, vector<128x128xf32>, vector<8x128xf32> -> vector<8x128xf32>
    %7 = arith.addf %3, %6 : vector<8x128xf32>
    %c0_6 = arith.constant 0 : index
    %c0_7 = arith.constant 0 : index
    %8 = vector.load %arg9[%c0_6, %c0_7] : memref<8x128xf32, #tpu.memory_space<vmem>>, vector<8x128xf32>
    tpu.vector_store %arg9[%c0_6, %c0_7], %7 {strides = array<i32>} : memref<8x128xf32, #tpu.memory_space<vmem>>, vector<8x128xf32>,
    %c0_i32_8 = arith.constant 0 : i32
    %9 = arith.cmpi eq, %arg2, %c0_i32_8 : i32
    %10 = arith.extui %9 : i1 to i32
    %c0_i32_9 = arith.constant 0 : i32
    %11 = arith.cmpi ne, %10, %c0_i32_9 : i32
    scf.if %11 {
      %c0_10 = arith.constant 0 : index
      %c0_11 = arith.constant 0 : index
      %12 = vector.load %arg9[%c0_10, %c0_11] : memref<8x128xf32, #tpu.memory_space<vmem>>, vector<8x128xf32>
      %c0_12 = arith.constant 0 : index
      %c0_13 = arith.constant 0 : index
      %13 = vector.load %arg5[%c0_12, %c0_13] : memref<8x128xf32, #tpu.memory_space<vmem>>, vector<8x128xf32>
      %c0_14 = arith.constant 0 : index
      %c0_15 = arith.constant 0 : index
      %14 = vector.load %arg6[%c0_14, %c0_15] : memref<1x128xf32, #tpu.memory_space<vmem>>, vector<1x128xf32>
      %15 = vector.broadcast %14 : vector<1x128xf32> to vector<8x128xf32>
      %16 = arith.mulf %13, %15 : vector<8x128xf32>
      %17 = arith.subf %12, %16 : vector<8x128xf32>
      %c0_16 = arith.constant 0 : index
      %c0_17 = arith.constant 0 : index
      %18 = vector.load %arg7[%c0_16, %c0_17] : memref<1x128xf32, #tpu.memory_space<vmem>>, vector<1x128xf32>
      %19 = vector.broadcast %18 : vector<1x128xf32> to vector<8x128xf32>
      %20 = arith.addf %17, %19 : vector<8x128xf32>
      %c0_18 = arith.constant 0 : index
      %c0_19 = arith.constant 0 : index
      %21 = vector.load %arg8[%c0_18, %c0_19] : memref<8x128xf32, #tpu.memory_space<vmem>>, vector<8x128xf32>
      tpu.vector_store %arg8[%c0_18, %c0_19], %20 {strides = array<i32>} : memref<8x128xf32, #tpu.memory_space<vmem>>, vector<8x128xf32>,
    } else {
    }
    return
  }
  func.func @transform_0(%arg0: i32, %arg1: i32, %arg2: i32) -> (i32, i32) {
    %c0_i32 = arith.constant 0 : i32
    return %arg0, %arg2 : i32, i32
  }
  func.func @transform_1(%arg0: i32, %arg1: i32, %arg2: i32) -> (i32, i32) {
    %c0_i32 = arith.constant 0 : i32
    return %arg1, %arg2 : i32, i32
  }
  func.func @transform_2(%arg0: i32, %arg1: i32, %arg2: i32) -> (i32, i32) {
    %c0_i32 = arith.constant 0 : i32
    return %arg0, %arg1 : i32, i32
  }
  func.func @transform_3(%arg0: i32, %arg1: i32, %arg2: i32) -> (i32, i32) {
    %c0_i32 = arith.constant 0 : i32
    %c0_i32_0 = arith.constant 0 : i32
    return %c0_i32, %arg1 : i32, i32
  }
  func.func @transform_4(%arg0: i32, %arg1: i32, %arg2: i32) -> (i32, i32) {
    %c0_i32 = arith.constant 0 : i32
    %c0_i32_0 = arith.constant 0 : i32
    return %c0_i32, %arg1 : i32, i32
  }
  func.func @transform_5(%arg0: i32, %arg1: i32, %arg2: i32) -> (i32, i32) {
    %c0_i32 = arith.constant 0 : i32
    return %arg0, %arg1 : i32, i32
  }
}

</mosaic_0001>

<llo_original>
// kernel: feature_regression.1
$region0: #{feature_regression.1}
  #allocation0 [shape = 'u32[]', space=smem, size = 0x4, offset = 0x4, fixed_abs, tag = 'smem constant byte address 0x4 - core index']
  #allocation1 [shape = 'u32[144,128]{1,0:T(1,128)}', space=vmem, size = 0x12000, scoped, tag = 'internal scratch']
  #allocation2 [shape = 'f32[8,128]{1,0:T(8,128)}', space=vmem, size = 0x1000, scoped, tag = 'scratch operand']
  %s0 = inlined_call_operand.vmem [shape: f32[8,128], index: 0, kind: input, shape index: {}, may-alias: {0,2}]
  %s1 = inlined_call_operand.vmem [shape: f32[128,128], index: 1, kind: input, shape index: {}]
  %s2 = inlined_call_operand.vmem [shape: f32[8,128], index: 2, kind: input, shape index: {}, may-alias: {0,2}]
  %s3 = inlined_call_operand.vmem [shape: f32[1,128], index: 3, kind: input, shape index: {}]
  %s4 = inlined_call_operand.vmem [shape: f32[1,128], index: 4, kind: input, shape index: {}]
  %s5 = inlined_call_operand.hbm [shape: f32[8,128], index: 5, kind: output, shape index: {}]
  %s6 = sld [smem:[#allocation0]]
  $region38: #{feature_regression.1} parent=0
    _
  %s8 = ssub.s32 1, %s6
  %s9 = scalar_select 0, %s8, %s6
  $region1: #{feature_regression.1} parent=0
    #allocation3 [shape = 'u8[4096]{0}', space=vmem, size = 0x1000, scoped, tag = 'output window, operand 0, single buffered']
    #allocation4 [shape = 's32[1]{0}', space=sflag, size = 0x4, scoped, tag = 'scoped memory for feature_regression.1']
    %10 = vsyncpa [#allocation4], 0
    // Predicated region
    $region2: #{feature_regression.1} parent=1 // pred_check
      _
    $region3: #{feature_regression.1} parent=1 // pred_check_branch
      %12 = sbr.rel (0) target = $region5
    $region4: #{feature_regression.1} parent=1 // pred_region
      _
    $region5: #{feature_regression.1} parent=1 // pred_fallthru
      _
    // Predicated region
    $region6: #{feature_regression.1} parent=1 // pred_check
      _
    $region7: #{feature_regression.1} parent=1 // pred_check_branch
      %14 = sbr.rel (0) target = $region9
    $region8: #{feature_regression.1} parent=1 // pred_region
      _
    $region9: #{feature_regression.1} parent=1 // pred_fallthru
      _
    // Predicated region
    $region10: #{feature_regression.1} parent=1 // pred_check
      _
    $region11: #{feature_regression.1} parent=1 // pred_check_branch
      %16 = sbr.rel (0) target = $region13
    $region12: #{feature_regression.1} parent=1 // pred_region
      _
    $region13: #{feature_regression.1} parent=1 // pred_fallthru
      _
    // Predicated region
    $region14: #{feature_regression.1} parent=1 // pred_check
      _
    $region15: #{feature_regression.1} parent=1 // pred_check_branch
      %18 = sbr.rel (0) target = $region17
    $region16: #{feature_regression.1} parent=1 // pred_region
      _
    $region17: #{feature_regression.1} parent=1 // pred_fallthru
      _
    // Predicated region
    $region18: #{feature_regression.1} parent=1 // pred_check
      _
    $region19: #{feature_regression.1} parent=1 // pred_check_branch
      %20 = sbr.rel (0) target = $region21
    $region20: #{feature_regression.1} parent=1 // pred_region
      _
    $region21: #{feature_regression.1} parent=1 // pred_fallthru
      _
    %p21 = scmp.eq.s32.totalorder 0, 0
    // Predicated region
    $region22: #{feature_regression.1} parent=1 // pred_check
      %p22 = pneg %p21
    $region23: #{feature_regression.1} parent=1 // pred_check_branch
      %24 = sbr.rel (%p22) target = $region25
    $region24: #{feature_regression.1} parent=1 // pred_region
      %25 = vst [vmem:[#allocation2] sm:$0xff] 0.0
    $region25: #{feature_regression.1} parent=1 // pred_fallthru
      _
    %v26 = vld [vmem:[#allocation2] sm:$0xff]
    %v27 = vld [vmem:[%s0] sm:$0xff]
    %v28 = vld [vmem:[%s1] sm:$0xff]
    %v29 = vld [vmem:[%s1 + $0x8] sm:$0xff]
    %v30 = vld [vmem:[%s1 + $0x10] sm:$0xff]
    %v31 = vld [vmem:[%s1 + $0x18] sm:$0xff]
    %v32 = vld [vmem:[%s1 + $0x20] sm:$0xff]
    %v33 = vld [vmem:[%s1 + $0x28] sm:$0xff]
    %v34 = vld [vmem:[%s1 + $0x30] sm:$0xff]
    %v35 = vld [vmem:[%s1 + $0x38] sm:$0xff]
    %v36 = vld [vmem:[%s1 + $0x40] sm:$0xff]
    %v37 = vld [vmem:[%s1 + $0x48] sm:$0xff]
    %v38 = vld [vmem:[%s1 + $0x50] sm:$0xff]
    %v39 = vld [vmem:[%s1 + $0x58] sm:$0xff]
    %v40 = vld [vmem:[%s1 + $0x60] sm:$0xff]
    %v41 = vld [vmem:[%s1 + $0x68] sm:$0xff]
    %v42 = vld [vmem:[%s1 + $0x70] sm:$0xff]
    %v43 = vld [vmem:[%s1 + $0x78] sm:$0xff]
    %44 = vmatprep.subr.mxu0 0.0
    %45 = vmatpush1.xpose.msra.mxu0 %v28
    %46 = vmatprep.subr.mxu0 0.0
    %47 = vmatpush1.xpose.msra.mxu0 %v29
    %48 = vmatprep.subr.mxu0 0.0
    %49 = vmatpush1.xpose.msra.mxu0 %v30
    %50 = vmatprep.subr.mxu0 0.0
    %51 = vmatpush1.xpose.msra.mxu0 %v31
    %52 = vmatprep.subr.mxu0 0.0
    %53 = vmatpush1.xpose.msra.mxu0 %v32
    %54 = vmatprep.subr.mxu0 0.0
    %55 = vmatpush1.xpose.msra.mxu0 %v33
    %56 = vmatprep.subr.mxu0 0.0
    %57 = vmatpush1.xpose.msra.mxu0 %v34
    %58 = vmatprep.subr.mxu0 0.0
    %59 = vmatpush1.xpose.msra.mxu0 %v35
    %60 = vmatprep.subr.mxu0 0.0
    %61 = vmatpush1.xpose.msra.mxu0 %v36
    %62 = vmatprep.subr.mxu0 0.0
    %63 = vmatpush1.xpose.msra.mxu0 %v37
    %64 = vmatprep.subr.mxu0 0.0
    %65 = vmatpush1.xpose.msra.mxu0 %v38
    %66 = vmatprep.subr.mxu0 0.0
    %67 = vmatpush1.xpose.msra.mxu0 %v39
    %68 = vmatprep.subr.mxu0 0.0
    %69 = vmatpush1.xpose.msra.mxu0 %v40
    %70 = vmatprep.subr.mxu0 0.0
    %71 = vmatpush1.xpose.msra.mxu0 %v41
    %72 = vmatprep.subr.mxu0 0.0
    %73 = vmatpush1.xpose.msra.mxu0 %v42
    %74 = vmatprep.subr.mxu0 0.0
    %75 = vmatpush1.xpose.msra.mxu0 %v43
    %76 = vmatprep.subr.mxu0 0.0
    %77 = vmatpush1.xpose.msra.mxu0 0.0
    %78 = vmatprep.subr.mxu0 0.0
    %79 = vmatpush1.xpose.msra.mxu0 0.0
    %80 = vmatprep.subr.mxu0 0.0
    %81 = vmatpush1.xpose.msra.mxu0 0.0
    %82 = vmatprep.subr.mxu0 0.0
    %83 = vmatpush1.xpose.msra.mxu0 0.0
    %84 = vmatprep.subr.mxu0 0.0
    %85 = vmatpush1.xpose.msra.mxu0 0.0
    %86 = vmatprep.subr.mxu0 0.0
    %87 = vmatpush1.xpose.msra.mxu0 0.0
    %88 = vmatprep.subr.mxu0 0.0
    %89 = vmatpush1.xpose.msra.mxu0 0.0
    %90 = vmatprep.subr.mxu0 0.0
    %91 = vmatpush1.xpose.msra.mxu0 0.0
    %92 = vmatprep.subr.mxu0 0.0
    %93 = vmatpush1.xpose.msra.mxu0 0.0
    %94 = vmatprep.subr.mxu0 0.0
    %95 = vmatpush1.xpose.msra.mxu0 0.0
    %96 = vmatprep.subr.mxu0 0.0
    %97 = vmatpush1.xpose.msra.mxu0 0.0
    %98 = vmatprep.subr.mxu0 0.0
    %99 = vmatpush1.xpose.msra.mxu0 0.0
    %100 = vmatprep.subr.mxu0 0.0
    %101 = vmatpush1.xpose.msra.mxu0 0.0
    %102 = vmatprep.subr.mxu0 0.0
    %103 = vmatpush1.xpose.msra.mxu0 0.0
    %104 = vmatprep.subr.mxu0 0.0
    %105 = vmatpush1.xpose.msra.mxu0 0.0
    %106 = vmatprep.subr.mxu0 0.0
    %107 = vmatpush1.xpose.msra.mxu0 0.0
    %108 = vmatprep.mubr.f32.mxu0 0.0
    %109 = vmatmul.mubr.f32.gmra.mrb[0].mxu0 %v27
    %v110 = vpop.f32.mrb[0].mxu0
    %v111 = vadd.f32 0.0, %v110
    %v112 = vpop.f32.mrb[0].mxu0
    %113 = vdwg.mxu0
    %v114 = vadd.f32 %v26, %v111
    %115 = vst [vmem:[#allocation2] sm:$0xff] %v114
    // Predicated region
    $region26: #{feature_regression.1} parent=1 // pred_check
      %p116 = pneg %p21
    $region27: #{feature_regression.1} parent=1 // pred_check_branch
      %118 = sbr.rel (%p116) target = $region29
    $region28: #{feature_regression.1} parent=1 // pred_region
      %v119 = vld [vmem:[#allocation2] sm:$0xff]
      %v120 = vld [vmem:[%s2] sm:$0xff]
      %v121 = vld [vmem:[%s3] sm:$0x1]
      %v123 = vlaneseq
      %v124 = vshrl.u32 %v123, 7
      %v125 = vsub.s32 0, %v124
      %v126 = vrot.slane %v121, %v125
      %v128 = vmul.f32 %v120, %v126
      %v129 = vsub.f32 %v119, %v128
      %v130 = vld [vmem:[%s4] sm:$0x1]
      %v132 = vlaneseq
      %v133 = vshrl.u32 %v132, 7
      %v134 = vsub.s32 0, %v133
      %v135 = vrot.slane %v130, %v134
      %v137 = vadd.f32 %v129, %v135
      %138 = vst [vmem:[#allocation3] sm:$0xff] %v137
    $region29: #{feature_regression.1} parent=1 // pred_fallthru
      _
    // Predicated region
    $region30: #{feature_regression.1} parent=1 // pred_check
      _
    $region31: #{feature_regression.1} parent=1 // pred_check_branch
      %140 = sbr.rel (0) target = $region33
    $region32: #{feature_regression.1} parent=1 // pred_region
      %s142 = ssub.s32 128, 128
      %143 = vsyncadd [#allocation4], %s142
      %s145 = sshll.u32 [#allocation3], 4
      %s146 = int_to_ptr.vmem [resolvable:$true] %s145
      %148 = dma.vmem_to_hbm [thread:$0]  %s146, 128, %s5, [#allocation4]
    $region33: #{feature_regression.1} parent=1 // pred_fallthru
      _
    // Predicated region
    $region34: #{feature_regression.1} parent=1 // pred_check
      _
    $region35: #{feature_regression.1} parent=1 // pred_check_branch
      %150 = sbr.rel (0) target = $region37
    $region36: #{feature_regression.1} parent=1 // pred_region
      %151 = dma.done [#allocation4], 128
    $region37: #{feature_regression.1} parent=1 // pred_fallthru
      _
    %152 = vsyncpa [#allocation4], 1

</llo_original>
